<compile_context>
chip_gen: v7x
topology: tpu7x:2x2x1
jax: 0.10.0
libtpu: 0.0.40
codegen_flags: <defaults>
</compile_context>

<pallas_src>
import math

import jax
import jax.numpy as jnp
from jax import lax
from jax.experimental import pallas as pl
from jax.experimental.pallas import tpu as pltpu


def _round_up(n, m):
    return ((n + m - 1) // m) * m


def _cdiv(a, b):
    return (a + b - 1) // b


def _pad_to(a, shape):
    pads = [(0, t - s) for s, t in zip(a.shape, shape)]
    if any(p[1] for p in pads):
        return jnp.pad(a, pads)
    return a


def _supports_pipeline_mode():
    """Does this JAX accept BlockSpec(pipeline_mode=pl.Buffered(n))?"""
    try:
        pl.BlockSpec((8, 128), lambda i: (0, 0), pipeline_mode=pl.Buffered(1))
        return True
    except Exception:
        return False


_HAS_PIPELINE_MODE = _supports_pipeline_mode()


def _resident_spec(shape):
    """Constant-index block: DMA'd once; single-buffered to halve VMEM use."""
    if _HAS_PIPELINE_MODE:
        return pl.BlockSpec(shape, lambda i: (0, 0), pipeline_mode=pl.Buffered(1))
    return pl.BlockSpec(shape, lambda i: (0, 0))


def _vmem_limit_bytes():
    """Per-generation scoped-VMEM budget with headroom for internal scratch."""
    cap = None
    try:
        cap = getattr(pltpu.get_tpu_info(), "vmem_capacity_bytes", None)
    except Exception:
        cap = None
    if not cap:
        cap = 64 * 1024 * 1024                 # conservative fallback (v7x physical)
    return int(min(int(cap * 0.85), 112 * 1024 * 1024))


def transformer_layer(x, params, *, compute_dtype=jnp.float32, max_tile=256,
                      return_attn=True):
    """x: [seq, d_model] float32. params: dict of weights/biases ([in, out] layout)."""
    S, D = x.shape
    Di = params["wq"].shape[1]
    F = params["w1"].shape[1]

    # Lane-dense padding of feature dims.
    Dp = _round_up(D, 128)
    Dip = _round_up(Di, 128)
    Fp = _round_up(F, 128)

    # Query-row tiling: at least 2 tiles when S permits (v7x megacore) and TM
    # picked to minimize last-tile padding (S=200 -> TM=104, Sp=208, not 256).
    min_tiles = 2 if S >= 16 else 1
    n_tiles = max(_cdiv(S, max_tile), min_tiles)
    TM = _round_up(_cdiv(S, n_tiles), 8)
    Sp = n_tiles * TM

    f32 = jnp.float32
    xp = _pad_to(x.astype(f32), (Sp, Dp))
    # Kernel 1 reads x in the compute dtype (halves its activation DMA on the
    # bf16 path); kernel 2 keeps the f32 copy for exact residual adds.
    xp_c = xp if compute_dtype == f32 else xp.astype(compute_dtype)

    wq = _pad_to(params["wq"], (Dp, Dip)).astype(compute_dtype)
    wk = _pad_to(params["wk"], (Dp, Dip)).astype(compute_dtype)
    wv = _pad_to(params["wv"], (Dp, Dp)).astype(compute_dtype)
    w1 = _pad_to(params["w1"], (Dp, Fp)).astype(compute_dtype)
    w2 = _pad_to(params["w2"], (Fp, Dp)).astype(compute_dtype)
    bq = _pad_to(params["bq"].reshape(1, Di).astype(f32), (1, Dip))
    bk = _pad_to(params["bk"].reshape(1, Di).astype(f32), (1, Dip))
    bv = _pad_to(params["bv"].reshape(1, D).astype(f32), (1, Dp))
    b1 = _pad_to(params["b1"].reshape(1, F).astype(f32), (1, Fp))
    b2 = _pad_to(params["b2"].reshape(1, D).astype(f32), (1, Dp))

    needs_mask = Sp != S
    if needs_mask:
        key_idx = jnp.arange(Sp, dtype=jnp.int32)
        # Additive mask row: 0 for valid keys, -inf for padded keys.
        mask_row = jnp.where(key_idx < S, 0.0, -jnp.inf).astype(f32).reshape(1, Sp)

    scale = 1.0 / math.sqrt(float(Di))
    # Exact reciprocal on the f32 validation path; EUP approx on the bf16 path.
    approx_recip = compute_dtype != jnp.float32
    cbytes = jnp.dtype(compute_dtype).itemsize

    compiler_params = pltpu.CompilerParams(
        dimension_semantics=("parallel",),          # shard query tiles across cores
        vmem_limit_bytes=_vmem_limit_bytes(),
    )

    def row_spec(cols):
        return pl.BlockSpec((TM, cols), lambda i: (i, 0))

    # --------------- kernel 1: K / V projections (row-tiled) -------------------
    def kv_kernel(x_ref, wk_ref, bk_ref, wv_ref, bv_ref, k_ref, v_ref):
        xc = x_ref[...]
        k = jnp.dot(xc, wk_ref[...], preferred_element_type=jnp.float32) + bk_ref[...]
        v = jnp.dot(xc, wv_ref[...], preferred_element_type=jnp.float32) + bv_ref[...]
        k_ref[...] = k.astype(k_ref.dtype)
        v_ref[...] = v.astype(v_ref.dtype)

    kv_cost = pl.CostEstimate(
        flops=2 * Sp * Dp * (Dip + Dp),
        transcendentals=0,
        bytes_accessed=(Sp * Dp * cbytes
                        + (Dp * Dip + Dp * Dp) * cbytes
                        + (Dip + Dp) * 4
                        + Sp * (Dip + Dp) * cbytes),
    )

    k, v = pl.pallas_call(
        kv_kernel,
        grid=(n_tiles,),
        in_specs=[
            row_spec(Dp),
            _resident_spec((Dp, Dip)), _resident_spec((1, Dip)),
            _resident_spec((Dp, Dp)), _resident_spec((1, Dp)),
        ],
        out_specs=(row_spec(Dip), row_spec(Dp)),
        out_shape=(
            jax.ShapeDtypeStruct((Sp, Dip), compute_dtype),
            jax.ShapeDtypeStruct((Sp, Dp), compute_dtype),
        ),
        compiler_params=compiler_params,
        cost_estimate=kv_cost,
    )(xp_c, wk, bk, wv, bv)

    # - kernel 2: fused Q proj + attention + residual + FFN + residual (q-tiled) -
    def attn_ffn_kernel(*refs):
        it = iter(refs)
        x_ref = next(it)
        k_ref = next(it)
        v_ref = next(it)
        wq_ref = next(it)
        bq_ref = next(it)
        mask_ref = next(it) if needs_mask else None
        w1_ref = next(it)
        b1_ref = next(it)
        w2_ref = next(it)
        b2_ref = next(it)
        out_ref = next(it)
        attn_ref = next(it) if return_attn else None

        x_f32 = x_ref[...]
        # Fused Q projection (no HBM round-trip for Q).
        q = jnp.dot(x_f32.astype(compute_dtype), wq_ref[...],
                    preferred_element_type=jnp.float32) + bq_ref[...]

        # scores[TM, Sp]: contract last dims of Q[TM, Dip] and K[Sp, Dip]
        # (no explicit k.T / XLU transpose).
        scores = lax.dot_general(
            q.astype(compute_dtype), k_ref[...],
            dimension_numbers=(((1,), (1,)), ((), ())),
            preferred_element_type=jnp.float32) * scale
        if needs_mask:                       # static branch; single broadcast add
            scores = scores + mask_ref[...]

        m = jnp.max(scores, axis=-1, keepdims=True)
        e = jnp.exp(scores - m)
        denom = jnp.sum(e, axis=-1, keepdims=True)
        attn = e * pl.reciprocal(denom, approx=approx_recip)
        if attn_ref is not None:
            attn_ref[...] = attn.astype(attn_ref.dtype)

        mapped = jnp.dot(attn.astype(compute_dtype), v_ref[...],
                         preferred_element_type=jnp.float32) + x_f32

        h = jnp.dot(mapped.astype(compute_dtype), w1_ref[...],
                    preferred_element_type=jnp.float32) + b1_ref[...]
        h = jnp.maximum(h, 0.0)
        ff = jnp.dot(h.astype(compute_dtype), w2_ref[...],
                     preferred_element_type=jnp.float32) + b2_ref[...]
        out_ref[...] = (ff + mapped).astype(out_ref.dtype)

    in_specs = [
        row_spec(Dp),                    # x tile (Q projection input + residual)
        _resident_spec((Sp, Dip)),       # K (resident, single-buffered)
        _resident_spec((Sp, Dp)),        # V
        _resident_spec((Dp, Dip)), _resident_spec((1, Dip)),   # wq, bq
    ]
    operands = [xp, k, v, wq, bq]
    if needs_mask:
        in_specs.append(_resident_spec((1, Sp)))
        operands.append(mask_row)
    in_specs += [
        _resident_spec((Dp, Fp)), _resident_spec((1, Fp)),     # w1, b1
        _resident_spec((Fp, Dp)), _resident_spec((1, Dp)),     # w2, b2
    ]
    operands += [w1, b1, w2, b2]

    out_specs = [row_spec(Dp)]
    out_shape = [jax.ShapeDtypeStruct((Sp, Dp), x.dtype)]
    if return_attn:
        out_specs.append(pl.BlockSpec((TM, Sp), lambda i: (i, 0)))
        out_shape.append(jax.ShapeDtypeStruct((Sp, Sp), jnp.float32))

    attn_cost = pl.CostEstimate(
        flops=2 * Sp * (Dp * Dip + Sp * (Dip + Dp) + 2 * Dp * Fp),
        transcendentals=Sp * Sp,
        bytes_accessed=(Sp * Dp * 4                                # x tiles
                        + Sp * (Dip + Dp) * cbytes                 # K, V
                        + (Dp * Dip + 2 * Dp * Fp) * cbytes        # wq, w1, w2
                        + (Dip + Fp + Dp) * 4                      # biases
                        + Sp * Dp * 4                              # out
                        + (Sp * Sp * 4 if return_attn else 0)),    # attn
    )

    results = pl.pallas_call(
        attn_ffn_kernel,
        grid=(n_tiles,),
        in_specs=in_specs,
        out_specs=tuple(out_specs),
        out_shape=tuple(out_shape),
        compiler_params=compiler_params,
        cost_estimate=attn_cost,
    )(*operands)

    if return_attn:
        out, attn = results
        return out[:S, :D], attn[:S, :S]
    out = results[0] if isinstance(results, (tuple, list)) else results
    return out[:S, :D], None


def init_params(key, d_model, d_internal, d_ff):
    """Deterministic synthetic init (matches nn.Linear shapes, JAX [in, out] layout)."""
    ks = jax.random.split(key, 10)

    def lin(kw, kb, fan_in, fan_out):
        bound = 1.0 / math.sqrt(fan_in)
        w = jax.random.uniform(kw, (fan_in, fan_out), jnp.float32, -bound, bound)
        b = jax.random.uniform(kb, (fan_out,), jnp.float32, -bound, bound)
        return w, b

    wq, bq = lin(ks[0], ks[1], d_model, d_internal)
    wk, bk = lin(ks[2], ks[3], d_model, d_internal)
    wv, bv = lin(ks[4], ks[5], d_model, d_model)
    w1, b1 = lin(ks[6], ks[7], d_model, d_ff)
    w2, b2 = lin(ks[8], ks[9], d_ff, d_model)
    return dict(wq=wq, bq=bq, wk=wk, bk=bk, wv=wv, bv=bv,
                w1=w1, b1=b1, w2=w2, b2=b2)


def reference(x, p):
    """Pure-JAX reference of the PyTorch forward."""
    q = x @ p["wq"] + p["bq"]
    k = x @ p["wk"] + p["bk"]
    v = x @ p["wv"] + p["bv"]
    scores = (q @ k.T) / math.sqrt(p["wq"].shape[1])
    attn = jax.nn.softmax(scores, axis=-1)
    mapped = attn @ v + x
    out = jnp.maximum(mapped @ p["w1"] + p["b1"], 0.0) @ p["w2"] + p["b2"] + mapped
    return out, attn


if __name__ == "__main__":
    key = jax.random.PRNGKey(0)
    k_x1, k_p1, k_x2, k_p2 = jax.random.split(key, 4)

    # ---- Test 1: module's toy shapes, f32 compute, single query tile ----
    seq, d_model, d_internal, d_ff = 8, 32, 16, 64
    x1 = jax.random.normal(k_x1, (seq, d_model), jnp.float32)
    p1 = init_params(k_p1, d_model, d_internal, d_ff)

    out1, attn1 = transformer_layer(x1, p1)
    out1 = jax.block_until_ready(out1)
    attn1 = jax.block_until_ready(attn1)
    ref_out1, ref_attn1 = reference(x1, p1)
    assert out1.shape == (seq, d_model) and attn1.shape == (seq, seq)
    assert jnp.allclose(out1, ref_out1, atol=1e-4, rtol=1e-4)
    assert jnp.allclose(attn1, ref_attn1, atol=1e-5, rtol=1e-5)

    # ---- Test 2: two query tiles (TM=104, Sp=208) with key masking, f32 ----
    S2, D2, Di2, F2 = 200, 96, 48, 160
    x2 = jax.random.normal(k_x2, (S2, D2), jnp.float32)
    p2 = init_params(k_p2, D2, Di2, F2)

    out2, attn2 = transformer_layer(x2, p2)
    out2 = jax.block_until_ready(out2)
    attn2 = jax.block_until_ready(attn2)
    ref_out2, ref_attn2 = reference(x2, p2)
    assert out2.shape == (S2, D2) and attn2.shape == (S2, S2)
    assert jnp.allclose(out2, ref_out2, atol=1e-3, rtol=1e-3)
    assert jnp.allclose(attn2, ref_attn2, atol=1e-4, rtol=1e-3)

    # ---- Test 3: bf16 fast path (bf16 MXU matmuls, f32 accum, approx recip) ----
    out3, attn3 = transformer_layer(x2, p2, compute_dtype=jnp.bfloat16)
    out3 = jax.block_until_ready(out3)
    attn3 = jax.block_until_ready(attn3)
    assert out3.shape == (S2, D2) and attn3.shape == (S2, S2)
    assert jnp.allclose(out3, ref_out2, atol=1e-1, rtol=1e-1)
    assert jnp.allclose(attn3, ref_attn2, atol=5e-2, rtol=5e-2)

    # ---- Test 4: attention-matrix output disabled (skips Sp^2 HBM writeback) ----
    out4, attn4 = transformer_layer(x2, p2, return_attn=False)
    out4 = jax.block_until_ready(out4)
    assert attn4 is None
    assert jnp.allclose(out4, ref_out2, atol=1e-3, rtol=1e-3)

    print("KERNEL_OK")
</pallas_src>

<mosaic_0001>
module attributes {stable_mosaic.version = 11 : i64} {
  func.func @kv_kernel(%arg0: i32, %arg1: memref<8x128xf32, #tpu.memory_space<vmem>>, %arg2: memref<128x128xf32, #tpu.memory_space<vmem>>, %arg3: memref<1x128xf32, #tpu.memory_space<vmem>>, %arg4: memref<128x128xf32, #tpu.memory_space<vmem>>, %arg5: memref<1x128xf32, #tpu.memory_space<vmem>>, %arg6: memref<8x128xf32, #tpu.memory_space<vmem>>, %arg7: memref<8x128xf32, #tpu.memory_space<vmem>>) attributes {dimension_semantics = [#tpu.dimension_semantics<parallel>], iteration_bounds = array<i64: 1>, scalar_prefetch = 0 : i64, scratch_operands = 0 : i64, tpu.core_type = #tpu.core_type<tc>, window_params = [{transform_indices = @transform_0, window_bounds = array<i64: 8, 128>}, {pipeline_mode = #tpu.pipeline_mode<synchronous>, transform_indices = @transform_1, window_bounds = array<i64: 128, 128>}, {pipeline_mode = #tpu.pipeline_mode<synchronous>, transform_indices = @transform_2, window_bounds = array<i64: 1, 128>}, {pipeline_mode = #tpu.pipeline_mode<synchronous>, transform_indices = @transform_3, window_bounds = array<i64: 128, 128>}, {pipeline_mode = #tpu.pipeline_mode<synchronous>, transform_indices = @transform_4, window_bounds = array<i64: 1, 128>}, {transform_indices = @transform_5, window_bounds = array<i64: 8, 128>}, {transform_indices = @transform_6, window_bounds = array<i64: 8, 128>}]} {
    %c0 = arith.constant 0 : index
    %c0_0 = arith.constant 0 : index
    %0 = vector.load %arg1[%c0, %c0_0] : memref<8x128xf32, #tpu.memory_space<vmem>>, vector<8x128xf32>
    %c0_1 = arith.constant 0 : index
    %c0_2 = arith.constant 0 : index
    %1 = vector.load %arg2[%c0_1, %c0_2] : memref<128x128xf32, #tpu.memory_space<vmem>>, vector<128x128xf32>
    %cst = arith.constant dense<0.000000e+00> : vector<8x128xf32>
    %2 = tpu.matmul %0, %1, %cst {dimension_numbers = #tpu.dot_dimension_numbers<[1], [0], [0], [1], [0, 0, 1, 1], [], []>} : vector<8x128xf32>, vector<128x128xf32>, vector<8x128xf32> -> vector<8x128xf32>
    %c0_3 = arith.constant 0 : index
    %c0_4 = arith.constant 0 : index
    %3 = vector.load %arg3[%c0_3, %c0_4] : memref<1x128xf32, #tpu.memory_space<vmem>>, vector<1x128xf32>
    %4 = vector.broadcast %3 : vector<1x128xf32> to vector<8x128xf32>
    %5 = arith.addf %2, %4 : vector<8x128xf32>
    %c0_5 = arith.constant 0 : index
    %c0_6 = arith.constant 0 : index
    %6 = vector.load %arg4[%c0_5, %c0_6] : memref<128x128xf32, #tpu.memory_space<vmem>>, vector<128x128xf32>
    %cst_7 = arith.constant dense<0.000000e+00> : vector<8x128xf32>
    %7 = tpu.matmul %0, %6, %cst_7 {dimension_numbers = #tpu.dot_dimension_numbers<[1], [0], [0], [1], [0, 0, 1, 1], [], []>} : vector<8x128xf32>, vector<128x128xf32>, vector<8x128xf32> -> vector<8x128xf32>
    %c0_8 = arith.constant 0 : index
    %c0_9 = arith.constant 0 : index
    %8 = vector.load %arg5[%c0_8, %c0_9] : memref<1x128xf32, #tpu.memory_space<vmem>>, vector<1x128xf32>
    %9 = vector.broadcast %8 : vector<1x128xf32> to vector<8x128xf32>
    %10 = arith.addf %7, %9 : vector<8x128xf32>
    %c0_10 = arith.constant 0 : index
    %c0_11 = arith.constant 0 : index
    %11 = vector.load %arg6[%c0_10, %c0_11] : memref<8x128xf32, #tpu.memory_space<vmem>>, vector<8x128xf32>
    tpu.vector_store %arg6[%c0_10, %c0_11], %5 {strides = array<i32>} : memref<8x128xf32, #tpu.memory_space<vmem>>, vector<8x128xf32>,
    %c0_12 = arith.constant 0 : index
    %c0_13 = arith.constant 0 : index
    %12 = vector.load %arg7[%c0_12, %c0_13] : memref<8x128xf32, #tpu.memory_space<vmem>>, vector<8x128xf32>
    tpu.vector_store %arg7[%c0_12, %c0_13], %10 {strides = array<i32>} : memref<8x128xf32, #tpu.memory_space<vmem>>, vector<8x128xf32>,
    return
  }
  func.func @transform_0(%arg0: i32) -> (i32, i32) {
    %c0_i32 = arith.constant 0 : i32
    %c0_i32_0 = arith.constant 0 : i32
    return %arg0, %c0_i32 : i32, i32
  }
  func.func @transform_1(%arg0: i32) -> (i32, i32) {
    %c0_i32 = arith.constant 0 : i32
    %c0_i32_0 = arith.constant 0 : i32
    %c0_i32_1 = arith.constant 0 : i32
    return %c0_i32, %c0_i32_0 : i32, i32
  }
  func.func @transform_2(%arg0: i32) -> (i32, i32) {
    %c0_i32 = arith.constant 0 : i32
    %c0_i32_0 = arith.constant 0 : i32
    %c0_i32_1 = arith.constant 0 : i32
    return %c0_i32, %c0_i32_0 : i32, i32
  }
  func.func @transform_3(%arg0: i32) -> (i32, i32) {
    %c0_i32 = arith.constant 0 : i32
    %c0_i32_0 = arith.constant 0 : i32
    %c0_i32_1 = arith.constant 0 : i32
    return %c0_i32, %c0_i32_0 : i32, i32
  }
  func.func @transform_4(%arg0: i32) -> (i32, i32) {
    %c0_i32 = arith.constant 0 : i32
    %c0_i32_0 = arith.constant 0 : i32
    %c0_i32_1 = arith.constant 0 : i32
    return %c0_i32, %c0_i32_0 : i32, i32
  }
  func.func @transform_5(%arg0: i32) -> (i32, i32) {
    %c0_i32 = arith.constant 0 : i32
    %c0_i32_0 = arith.constant 0 : i32
    return %arg0, %c0_i32 : i32, i32
  }
  func.func @transform_6(%arg0: i32) -> (i32, i32) {
    %c0_i32 = arith.constant 0 : i32
    %c0_i32_0 = arith.constant 0 : i32
    return %arg0, %c0_i32 : i32, i32
  }
}

</mosaic_0001>

<llo_original>
// kernel: tpu_custom_call.1
$region0: #{tpu_custom_call.1}
  #allocation0 [shape = 'u32[]', space=smem, size = 0x4, offset = 0x4, fixed_abs, tag = 'smem constant byte address 0x4 - core index']
  #allocation1 [shape = 'u32[144,128]{1,0:T(1,128)}', space=vmem, size = 0x12000, scoped, tag = 'internal scratch']
  %s0 = inlined_call_operand.hbm [shape: f32[8,128], index: 0, kind: input, shape index: {}]
  %s1 = inlined_call_operand.hbm [shape: f32[128,128], index: 1, kind: input, shape index: {}]
  %s2 = inlined_call_operand.vmem [shape: f32[1,128], index: 2, kind: input, shape index: {}]
  %s3 = inlined_call_operand.hbm [shape: f32[128,128], index: 3, kind: input, shape index: {}]
  %s4 = inlined_call_operand.vmem [shape: f32[1,128], index: 4, kind: input, shape index: {}]
  %s5 = inlined_call_operand.hbm [shape: f32[8,128], index: 5, kind: output, shape index: {0}]
  %s6 = inlined_call_operand.hbm [shape: f32[8,128], index: 6, kind: output, shape index: {1}]
  %7 = xla_tuple %s5, %s6
  %s8 = sld [smem:[#allocation0]]
  $region50: #{tpu_custom_call.1} parent=0
    _
  %s10 = ssub.s32 1, %s8
  %s11 = scalar_select 0, %s10, %s8
  $region1: #{tpu_custom_call.1} parent=0
    #allocation2 [shape = 'u8[4096]{0}', space=vmem, size = 0x1000, scoped, tag = 'input window, operand 0, single buffered']
    #allocation3 [shape = 's32[1]{0}', space=sflag, size = 0x4, scoped, tag = 'scoped memory for tpu_custom_call.1']
    #allocation4 [shape = 's32[1]{0}', space=sflag, size = 0x4, scoped, tag = 'scoped memory for tpu_custom_call.1']
    #allocation5 [shape = 'u8[65536]{0}', space=vmem, size = 0x10000, scoped, tag = 'input window, operand 1, single buffered']
    #allocation6 [shape = 's32[1]{0}', space=sflag, size = 0x4, scoped, tag = 'scoped memory for tpu_custom_call.1']
    #allocation7 [shape = 'u8[65536]{0}', space=vmem, size = 0x10000, scoped, tag = 'input window, operand 3, single buffered']
    #allocation8 [shape = 'u8[4096]{0}', space=vmem, size = 0x1000, scoped, tag = 'output window, operand 0, single buffered']
    #allocation9 [shape = 'u8[4096]{0}', space=vmem, size = 0x1000, scoped, tag = 'output window, operand 1, single buffered']
    #allocation10 [shape = 's32[1]{0}', space=sflag, size = 0x4, scoped, tag = 'scoped memory for tpu_custom_call.1']
    %12 = vsyncpa [#allocation3], 0
    %13 = vsyncpa [#allocation6], 0
    %14 = vsyncpa [#allocation4], 0
    %15 = vsyncpa [#allocation10], 0
    // Predicated region
    $region2: #{tpu_custom_call.1} parent=1 // pred_check
      _
    $region3: #{tpu_custom_call.1} parent=1 // pred_check_branch
      %17 = sbr.rel (0) target = $region5
    $region4: #{tpu_custom_call.1} parent=1 // pred_region
      %s19 = ssub.s32 128, 128
      %20 = vsyncadd [#allocation3], %s19
      %s22 = sshll.u32 [#allocation2], 4
      %s23 = int_to_ptr.vmem [resolvable:$true] %s22
      %25 = dma.hbm_to_vmem [thread:$0]  %s0, 128, %s23, [#allocation3]
    $region5: #{tpu_custom_call.1} parent=1 // pred_fallthru
      _
    // Predicated region
    $region6: #{tpu_custom_call.1} parent=1 // pred_check
      _
    $region7: #{tpu_custom_call.1} parent=1 // pred_check_branch
      %27 = sbr.rel (0) target = $region9
    $region8: #{tpu_custom_call.1} parent=1 // pred_region
      %s29 = ssub.s32 2048, 2048
      %30 = vsyncadd [#allocation6], %s29
      %s31 = sshll.u32 [#allocation5], 4
      %s32 = int_to_ptr.vmem [resolvable:$true] %s31
      %37 = dma.hbm_to_vmem [thread:$0]  %s1, 2048, %s32, [#allocation6], 128, 128, 8
    $region9: #{tpu_custom_call.1} parent=1 // pred_fallthru
      _
    // Predicated region
    $region10: #{tpu_custom_call.1} parent=1 // pred_check
      _
    $region11: #{tpu_custom_call.1} parent=1 // pred_check_branch
      %39 = sbr.rel (0) target = $region13
    $region12: #{tpu_custom_call.1} parent=1 // pred_region
      _
    $region13: #{tpu_custom_call.1} parent=1 // pred_fallthru
      _
    // Predicated region
    $region14: #{tpu_custom_call.1} parent=1 // pred_check
      _
    $region15: #{tpu_custom_call.1} parent=1 // pred_check_branch
      %41 = sbr.rel (0) target = $region17
    $region16: #{tpu_custom_call.1} parent=1 // pred_region
      %s43 = ssub.s32 2048, 2048
      %44 = vsyncadd [#allocation6], %s43
      %s45 = sshll.u32 [#allocation7], 4
      %s46 = int_to_ptr.vmem [resolvable:$true] %s45
      %51 = dma.hbm_to_vmem [thread:$0]  %s3, 2048, %s46, [#allocation6], 128, 128, 8
    $region17: #{tpu_custom_call.1} parent=1 // pred_fallthru
      _
    // Predicated region
    $region18: #{tpu_custom_call.1} parent=1 // pred_check
      _
    $region19: #{tpu_custom_call.1} parent=1 // pred_check_branch
      %53 = sbr.rel (0) target = $region21
    $region20: #{tpu_custom_call.1} parent=1 // pred_region
      _
    $region21: #{tpu_custom_call.1} parent=1 // pred_fallthru
      _
    // Predicated region
    $region22: #{tpu_custom_call.1} parent=1 // pred_check
      _
    $region23: #{tpu_custom_call.1} parent=1 // pred_check_branch
      %55 = sbr.rel (0) target = $region25
    $region24: #{tpu_custom_call.1} parent=1 // pred_region
      %56 = dma.done [#allocation3], 128
    $region25: #{tpu_custom_call.1} parent=1 // pred_fallthru
      _
    // Predicated region
    $region26: #{tpu_custom_call.1} parent=1 // pred_check
      _
    $region27: #{tpu_custom_call.1} parent=1 // pred_check_branch
      %58 = sbr.rel (0) target = $region29
    $region28: #{tpu_custom_call.1} parent=1 // pred_region
      %59 = dma.done [#allocation6], 2048
    $region29: #{tpu_custom_call.1} parent=1 // pred_fallthru
      _
    // Predicated region
    $region30: #{tpu_custom_call.1} parent=1 // pred_check
      _
    $region31: #{tpu_custom_call.1} parent=1 // pred_check_branch
      %61 = sbr.rel (0) target = $region33
    $region32: #{tpu_custom_call.1} parent=1 // pred_region
      %62 = dma.done [#allocation6], 2048
    $region33: #{tpu_custom_call.1} parent=1 // pred_fallthru
      _
    %v63 = vld [vmem:[#allocation2] sm:$0xff]
    %v64 = vld [vmem:[#allocation5] sm:$0xff]
    %v65 = vld [vmem:[#allocation5 + $0x8] sm:$0xff]
    %v66 = vld [vmem:[#allocation5 + $0x10] sm:$0xff]
    %v67 = vld [vmem:[#allocation5 + $0x18] sm:$0xff]
    %v68 = vld [vmem:[#allocation5 + $0x20] sm:$0xff]
    %v69 = vld [vmem:[#allocation5 + $0x28] sm:$0xff]
    %v70 = vld [vmem:[#allocation5 + $0x30] sm:$0xff]
    %v71 = vld [vmem:[#allocation5 + $0x38] sm:$0xff]
    %v72 = vld [vmem:[#allocation5 + $0x40] sm:$0xff]
    %v73 = vld [vmem:[#allocation5 + $0x48] sm:$0xff]
    %v74 = vld [vmem:[#allocation5 + $0x50] sm:$0xff]
    %v75 = vld [vmem:[#allocation5 + $0x58] sm:$0xff]
    %v76 = vld [vmem:[#allocation5 + $0x60] sm:$0xff]
    %v77 = vld [vmem:[#allocation5 + $0x68] sm:$0xff]
    %v78 = vld [vmem:[#allocation5 + $0x70] sm:$0xff]
    %v79 = vld [vmem:[#allocation5 + $0x78] sm:$0xff]
    %v80 = vld [vmem:[%s2] sm:$0x1]
    %v82 = vlaneseq
    %v83 = vshrl.u32 %v82, 7
    %v84 = vsub.s32 0, %v83
    %v85 = vrot.slane %v80, %v84
    %87 = vmatprep.subr.mxu0 0.0
    %88 = vmatpush1.msra.mxu0 %v64
    %89 = vmatprep.subr.mxu0 0.0
    %90 = vmatpush1.msra.mxu0 %v65
    %91 = vmatprep.subr.mxu0 0.0
    %92 = vmatpush1.msra.mxu0 %v66
    %93 = vmatprep.subr.mxu0 0.0
    %94 = vmatpush1.msra.mxu0 %v67
    %95 = vmatprep.subr.mxu0 0.0
    %96 = vmatpush1.msra.mxu0 %v68
    %97 = vmatprep.subr.mxu0 0.0
    %98 = vmatpush1.msra.mxu0 %v69
    %99 = vmatprep.subr.mxu0 0.0
    %100 = vmatpush1.msra.mxu0 %v70
    %101 = vmatprep.subr.mxu0 0.0
    %102 = vmatpush1.msra.mxu0 %v71
    %103 = vmatprep.subr.mxu0 0.0
    %104 = vmatpush1.msra.mxu0 %v72
    %105 = vmatprep.subr.mxu0 0.0
    %106 = vmatpush1.msra.mxu0 %v73
    %107 = vmatprep.subr.mxu0 0.0
    %108 = vmatpush1.msra.mxu0 %v74
    %109 = vmatprep.subr.mxu0 0.0
    %110 = vmatpush1.msra.mxu0 %v75
    %111 = vmatprep.subr.mxu0 0.0
    %112 = vmatpush1.msra.mxu0 %v76
    %113 = vmatprep.subr.mxu0 0.0
    %114 = vmatpush1.msra.mxu0 %v77
    %115 = vmatprep.subr.mxu0 0.0
    %116 = vmatpush1.msra.mxu0 %v78
    %117 = vmatprep.subr.mxu0 0.0
    %118 = vmatpush1.msra.mxu0 %v79
    %119 = vmatprep.subr.mxu0 0.0
    %120 = vmatpush1.msra.mxu0 0.0
    %121 = vmatprep.subr.mxu0 0.0
    %122 = vmatpush1.msra.mxu0 0.0
    %123 = vmatprep.subr.mxu0 0.0
    %124 = vmatpush1.msra.mxu0 0.0
    %125 = vmatprep.subr.mxu0 0.0
    %126 = vmatpush1.msra.mxu0 0.0
    %127 = vmatprep.subr.mxu0 0.0
    %128 = vmatpush1.msra.mxu0 0.0
    %129 = vmatprep.subr.mxu0 0.0
    %130 = vmatpush1.msra.mxu0 0.0
    %131 = vmatprep.subr.mxu0 0.0
    %132 = vmatpush1.msra.mxu0 0.0
    %133 = vmatprep.subr.mxu0 0.0
    %134 = vmatpush1.msra.mxu0 0.0
    %135 = vmatprep.subr.mxu0 0.0
    %136 = vmatpush1.msra.mxu0 0.0
    %137 = vmatprep.subr.mxu0 0.0
    %138 = vmatpush1.msra.mxu0 0.0
    %139 = vmatprep.subr.mxu0 0.0
    %140 = vmatpush1.msra.mxu0 0.0
    %141 = vmatprep.subr.mxu0 0.0
    %142 = vmatpush1.msra.mxu0 0.0
    %143 = vmatprep.subr.mxu0 0.0
    %144 = vmatpush1.msra.mxu0 0.0
    %145 = vmatprep.subr.mxu0 0.0
    %146 = vmatpush1.msra.mxu0 0.0
    %147 = vmatprep.subr.mxu0 0.0
    %148 = vmatpush1.msra.mxu0 0.0
    %149 = vmatprep.subr.mxu0 0.0
    %150 = vmatpush1.msra.mxu0 0.0
    %151 = vmatprep.mubr.f32.mxu0 0.0
    %152 = vmatmul.mubr.f32.gmra.mrb[0].mxu0 %v63
    %v153 = vpop.f32.mrb[0].mxu0
    %v154 = vadd.f32 %v85, %v153
    %v155 = vpop.f32.mrb[0].mxu0
    %156 = vdwg.mxu0
    %v157 = vld [vmem:[#allocation7] sm:$0xff]
    %v158 = vld [vmem:[#allocation7 + $0x8] sm:$0xff]
    %v159 = vld [vmem:[#allocation7 + $0x10] sm:$0xff]
    %v160 = vld [vmem:[#allocation7 + $0x18] sm:$0xff]
    %v161 = vld [vmem:[#allocation7 + $0x20] sm:$0xff]
    %v162 = vld [vmem:[#allocation7 + $0x28] sm:$0xff]
    %v163 = vld [vmem:[#allocation7 + $0x30] sm:$0xff]
    %v164 = vld [vmem:[#allocation7 + $0x38] sm:$0xff]
    %v165 = vld [vmem:[#allocation7 + $0x40] sm:$0xff]
    %v166 = vld [vmem:[#allocation7 + $0x48] sm:$0xff]
    %v167 = vld [vmem:[#allocation7 + $0x50] sm:$0xff]
    %v168 = vld [vmem:[#allocation7 + $0x58] sm:$0xff]
    %v169 = vld [vmem:[#allocation7 + $0x60] sm:$0xff]
    %v170 = vld [vmem:[#allocation7 + $0x68] sm:$0xff]
    %v171 = vld [vmem:[#allocation7 + $0x70] sm:$0xff]
    %v172 = vld [vmem:[#allocation7 + $0x78] sm:$0xff]
    %v173 = vld [vmem:[%s4] sm:$0x1]
    %v175 = vlaneseq
    %v176 = vshrl.u32 %v175, 7
    %v177 = vsub.s32 0, %v176
    %v178 = vrot.slane %v173, %v177
    %180 = vmatprep.subr.mxu0 0.0
    %181 = vmatpush1.msra.mxu0 %v157
    %182 = vmatprep.subr.mxu0 0.0
    %183 = vmatpush1.msra.mxu0 %v158
    %184 = vmatprep.subr.mxu0 0.0
    %185 = vmatpush1.msra.mxu0 %v159
    %186 = vmatprep.subr.mxu0 0.0
    %187 = vmatpush1.msra.mxu0 %v160
    %188 = vmatprep.subr.mxu0 0.0
    %189 = vmatpush1.msra.mxu0 %v161
    %190 = vmatprep.subr.mxu0 0.0
    %191 = vmatpush1.msra.mxu0 %v162
    %192 = vmatprep.subr.mxu0 0.0
    %193 = vmatpush1.msra.mxu0 %v163
    %194 = vmatprep.subr.mxu0 0.0
    %195 = vmatpush1.msra.mxu0 %v164
    %196 = vmatprep.subr.mxu0 0.0
    %197 = vmatpush1.msra.mxu0 %v165
    %198 = vmatprep.subr.mxu0 0.0
    %199 = vmatpush1.msra.mxu0 %v166
    %200 = vmatprep.subr.mxu0 0.0
    %201 = vmatpush1.msra.mxu0 %v167
    %202 = vmatprep.subr.mxu0 0.0
    %203 = vmatpush1.msra.mxu0 %v168
    %204 = vmatprep.subr.mxu0 0.0
    %205 = vmatpush1.msra.mxu0 %v169
    %206 = vmatprep.subr.mxu0 0.0
    %207 = vmatpush1.msra.mxu0 %v170
    %208 = vmatprep.subr.mxu0 0.0
    %209 = vmatpush1.msra.mxu0 %v171
    %210 = vmatprep.subr.mxu0 0.0
    %211 = vmatpush1.msra.mxu0 %v172
    %212 = vmatprep.subr.mxu0 0.0
    %213 = vmatpush1.msra.mxu0 0.0
    %214 = vmatprep.subr.mxu0 0.0
    %215 = vmatpush1.msra.mxu0 0.0
    %216 = vmatprep.subr.mxu0 0.0
    %217 = vmatpush1.msra.mxu0 0.0
    %218 = vmatprep.subr.mxu0 0.0
    %219 = vmatpush1.msra.mxu0 0.0
    %220 = vmatprep.subr.mxu0 0.0
    %221 = vmatpush1.msra.mxu0 0.0
    %222 = vmatprep.subr.mxu0 0.0
    %223 = vmatpush1.msra.mxu0 0.0
    %224 = vmatprep.subr.mxu0 0.0
    %225 = vmatpush1.msra.mxu0 0.0
    %226 = vmatprep.subr.mxu0 0.0
    %227 = vmatpush1.msra.mxu0 0.0
    %228 = vmatprep.subr.mxu0 0.0
    %229 = vmatpush1.msra.mxu0 0.0
    %230 = vmatprep.subr.mxu0 0.0
    %231 = vmatpush1.msra.mxu0 0.0
    %232 = vmatprep.subr.mxu0 0.0
    %233 = vmatpush1.msra.mxu0 0.0
    %234 = vmatprep.subr.mxu0 0.0
    %235 = vmatpush1.msra.mxu0 0.0
    %236 = vmatprep.subr.mxu0 0.0
    %237 = vmatpush1.msra.mxu0 0.0
    %238 = vmatprep.subr.mxu0 0.0
    %239 = vmatpush1.msra.mxu0 0.0
    %240 = vmatprep.subr.mxu0 0.0
    %241 = vmatpush1.msra.mxu0 0.0
    %242 = vmatprep.subr.mxu0 0.0
    %243 = vmatpush1.msra.mxu0 0.0
    %244 = vmatprep.mubr.f32.mxu0 0.0
    %245 = vmatmul.mubr.f32.gmra.mrb[0].mxu0 %v63
    %v246 = vpop.f32.mrb[0].mxu0
    %v247 = vadd.f32 %v178, %v246
    %v248 = vpop.f32.mrb[0].mxu0
    %249 = vdwg.mxu0
    %250 = vst [vmem:[#allocation8] sm:$0xff] %v154
    %251 = vst [vmem:[#allocation9] sm:$0xff] %v247
    // Predicated region
    $region34: #{tpu_custom_call.1} parent=1 // pred_check
      _
    $region35: #{tpu_custom_call.1} parent=1 // pred_check_branch
      %253 = sbr.rel (0) target = $region37
    $region36: #{tpu_custom_call.1} parent=1 // pred_region
      %s255 = ssub.s32 128, 128
      %256 = vsyncadd [#allocation4], %s255
      %s258 = sshll.u32 [#allocation8], 4
      %s259 = int_to_ptr.vmem [resolvable:$true] %s258
      %261 = dma.vmem_to_hbm [thread:$0]  %s259, 128, %s5, [#allocation4]
    $region37: #{tpu_custom_call.1} parent=1 // pred_fallthru
      _
    // Predicated region
    $region38: #{tpu_custom_call.1} parent=1 // pred_check
      _
    $region39: #{tpu_custom_call.1} parent=1 // pred_check_branch
      %263 = sbr.rel (0) target = $region41
    $region40: #{tpu_custom_call.1} parent=1 // pred_region
      %s265 = ssub.s32 128, 128
      %266 = vsyncadd [#allocation10], %s265
      %s268 = sshll.u32 [#allocation9], 4
      %s269 = int_to_ptr.vmem [resolvable:$true] %s268
      %271 = dma.vmem_to_hbm [thread:$0]  %s269, 128, %s6, [#allocation10]
    $region41: #{tpu_custom_call.1} parent=1 // pred_fallthru
      _
    // Predicated region
    $region42: #{tpu_custom_call.1} parent=1 // pred_check
      _
    $region43: #{tpu_custom_call.1} parent=1 // pred_check_branch
      %273 = sbr.rel (0) target = $region45
    $region44: #{tpu_custom_call.1} parent=1 // pred_region
      %274 = dma.done [#allocation4], 128
    $region45: #{tpu_custom_call.1} parent=1 // pred_fallthru
      _
    // Predicated region
    $region46: #{tpu_custom_call.1} parent=1 // pred_check
      _
    $region47: #{tpu_custom_call.1} parent=1 // pred_check_branch
      %276 = sbr.rel (0) target = $region49
    $region48: #{tpu_custom_call.1} parent=1 // pred_region
      %277 = dma.done [#allocation10], 128
    $region49: #{tpu_custom_call.1} parent=1 // pred_fallthru
      _
    %278 = vsyncpa [#allocation3], 1
    %279 = vsyncpa [#allocation6], 1
    %280 = vsyncpa [#allocation4], 1
    %281 = vsyncpa [#allocation10], 1

</llo_original>
